<compile_context>
chip_gen: v7x
topology: tpu7x:2x2x1
jax: 0.10.0
libtpu: 0.0.40
codegen_flags: <defaults>
</compile_context>

<pallas_src>
import jax
import jax.numpy as jnp
from jax.experimental import pallas as pl
from jax.experimental.pallas import tpu as pltpu


def _round_up(x, m):
    return ((x + m - 1) // m) * m


# --------------------------- single-tile fast path ---------------------------
def _dense_small_kernel(x_ref, w_ref, b_ref, o_ref):
    """Whole layer in one shot: o = x @ w.T + b (f32 accumulate)."""
    acc = jax.lax.dot_general(
        x_ref[...],
        w_ref[...],
        dimension_numbers=(((1,), (1,)), ((), ())),  # contract Din vs Din
        preferred_element_type=jnp.float32,
    )
    o_ref[...] = (acc + b_ref[...].astype(jnp.float32)).astype(o_ref.dtype)


# ------------------------------ tiled 3-D path -------------------------------
def _dense_tiled_kernel(x_ref, w_ref, b_ref, o_ref, acc_ref):
    """One (tm, tn) output tile, accumulating over the K grid axis.

    x_ref:   (tm, tk)      activation tile
    w_ref:   (tn, tk)      weight tile, original PyTorch [Dout, Din] layout
    b_ref:   (1,  tn)      bias tile
    o_ref:   (tm, tn)      output tile
    acc_ref: (tm, tn) f32  VMEM accumulator (persists across the K axis)
    """
    k = pl.program_id(2)

    @pl.when(k == 0)
    def _():
        acc_ref[...] = jnp.zeros_like(acc_ref)

    acc_ref[...] += jax.lax.dot_general(
        x_ref[...],
        w_ref[...],
        dimension_numbers=(((1,), (1,)), ((), ())),
        preferred_element_type=jnp.float32,
    )

    @pl.when(k == pl.num_programs(2) - 1)
    def _():
        o_ref[...] = (acc_ref[...] + b_ref[...].astype(jnp.float32)).astype(
            o_ref.dtype
        )


def dense_forward(x, weight, bias, *, compute_dtype=None):
    """y = x @ weight.T + bias, then reshape to [B, Dout, 1, 1].

    x:      [B, Din]
    weight: [Dout, Din]  (PyTorch nn.Linear layout; NOT transposed here)
    bias:   [Dout]
    compute_dtype: optionally cast MXU inputs (e.g. jnp.bfloat16);
        accumulation stays float32 either way.
    """
    B, din = x.shape
    dout, din_w = weight.shape
    assert din_w == din, "weight shape must be [output_dim, input_dim]"

    out_dtype = x.dtype
    if compute_dtype is not None:
        x = x.astype(compute_dtype)
        weight = weight.astype(compute_dtype)

    # ---- tile sizes: sublane(8)/lane(128)-aligned, VMEM-safe caps ----------
    tm = min(_round_up(B, 8), 256)        # batch rows
    tn = min(_round_up(dout, 128), 256)   # output features (lane-dense stores)
    tk = min(_round_up(din, 128), 512)    # contraction

    Mp = _round_up(B, tm)
    Np = _round_up(dout, tn)
    Kp = _round_up(din, tk)
    grid = (Mp // tm, Np // tn, Kp // tk)

    in_bytes = jnp.dtype(x.dtype).itemsize
    out_bytes = jnp.dtype(out_dtype).itemsize

    # ---------------- fast path: everything fits in one tile ----------------
    if grid == (1, 1, 1):
        bias2d = bias.reshape(1, dout)
        cost = pl.CostEstimate(
            flops=2 * B * din * dout,
            transcendentals=0,
            bytes_accessed=(B * din + dout * din) * in_bytes
            + dout * jnp.dtype(bias2d.dtype).itemsize
            + B * dout * out_bytes,
        )
        y = pl.pallas_call(
            _dense_small_kernel,
            out_shape=jax.ShapeDtypeStruct((B, dout), out_dtype),
            grid_spec=pltpu.PrefetchScalarGridSpec(
                num_scalar_prefetch=0,
                grid=(1,),
                in_specs=[
                    pl.BlockSpec((B, din), lambda i: (0, 0)),     # x (full)
                    pl.BlockSpec((dout, din), lambda i: (0, 0)),  # weight (full)
                    pl.BlockSpec((1, dout), lambda i: (0, 0)),    # bias (full)
                ],
                out_specs=pl.BlockSpec((B, dout), lambda i: (0, 0)),
            ),
            compiler_params=pltpu.CompilerParams(
                dimension_semantics=("arbitrary",),
            ),
            cost_estimate=cost,
        )(x, weight, bias2d)
        return y[..., None, None]  # [B, Dout, 1, 1]

    # ---------------------------- tiled path ---------------------------------
    # Zero-pad to the tile grid: K-padding contributes nothing to the dot;
    # padded M/N rows/cols are sliced off after the call.
    x_p = jnp.pad(x, ((0, Mp - B), (0, Kp - din)))
    w_p = jnp.pad(weight, ((0, Np - dout), (0, Kp - din)))
    b_p = jnp.pad(bias, (0, Np - dout)).reshape(1, Np)

    cost = pl.CostEstimate(
        flops=2 * Mp * Kp * Np,
        transcendentals=0,
        bytes_accessed=(Mp * Kp + Np * Kp) * in_bytes
        + Np * jnp.dtype(b_p.dtype).itemsize
        + Mp * Np * out_bytes,
    )

    y_p = pl.pallas_call(
        _dense_tiled_kernel,
        out_shape=jax.ShapeDtypeStruct((Mp, Np), out_dtype),
        grid_spec=pltpu.PrefetchScalarGridSpec(
            num_scalar_prefetch=0,
            grid=grid,
            in_specs=[
                pl.BlockSpec((tm, tk), lambda i, j, k: (i, k)),  # x
                pl.BlockSpec((tn, tk), lambda i, j, k: (j, k)),  # weight [Dout, Din]
                pl.BlockSpec((1, tn), lambda i, j, k: (0, j)),   # bias
            ],
            out_specs=pl.BlockSpec((tm, tn), lambda i, j, k: (i, j)),
            scratch_shapes=[pltpu.VMEM((tm, tn), jnp.float32)],
        ),
        compiler_params=pltpu.CompilerParams(
            dimension_semantics=("parallel", "parallel", "arbitrary"),
        ),
        cost_estimate=cost,
    )(x_p, w_p, b_p)

    y = y_p[:B, :dout]
    return y[..., None, None]  # [B, Dout, 1, 1]


if __name__ == "__main__":
    key = jax.random.PRNGKey(0)

    # ---- Case 1: toy-model size (exercises the single-tile fast path) ------
    B, input_dim, output_dim = 2, 32, 16
    k_x, k_w, k_b, key = jax.random.split(key, 4)
    bound = 1.0 / (input_dim ** 0.5)
    weight = jax.random.uniform(
        k_w, (output_dim, input_dim), jnp.float32, minval=-bound, maxval=bound
    )
    bias = jax.random.uniform(
        k_b, (output_dim,), jnp.float32, minval=-bound, maxval=bound
    )
    x = jax.random.normal(k_x, (B, input_dim), jnp.float32)

    out = jax.block_until_ready(dense_forward(x, weight, bias))
    ref = (
        jnp.dot(x, weight.T, precision=jax.lax.Precision.HIGHEST) + bias
    )[..., None, None]
    assert out.shape == (B, output_dim, 1, 1)
    assert jnp.allclose(out, ref, atol=1e-5, rtol=1e-5)

    # ---- Case 2: larger size (exercises the tiled 3-D grid + padding) ------
    B2, din2, dout2 = 260, 640, 384
    k_x2, k_w2, k_b2, key = jax.random.split(key, 4)
    bound2 = 1.0 / (din2 ** 0.5)
    weight2 = jax.random.uniform(
        k_w2, (dout2, din2), jnp.float32, minval=-bound2, maxval=bound2
    )
    bias2 = jax.random.uniform(
        k_b2, (dout2,), jnp.float32, minval=-bound2, maxval=bound2
    )
    x2 = jax.random.normal(k_x2, (B2, din2), jnp.float32)

    out2 = jax.block_until_ready(dense_forward(x2, weight2, bias2))
    ref2 = (
        jnp.dot(x2, weight2.T, precision=jax.lax.Precision.HIGHEST) + bias2
    )[..., None, None]
    assert out2.shape == (B2, dout2, 1, 1)
    assert jnp.allclose(out2, ref2, atol=2e-4, rtol=2e-4)

    print("KERNEL_OK")
</pallas_src>

<mosaic_0001>
module attributes {stable_mosaic.version = 11 : i64} {
  func.func @_dense_small_kernel(%arg0: i32, %arg1: memref<2x32xf32, #tpu.memory_space<vmem>>, %arg2: memref<16x32xf32, #tpu.memory_space<vmem>>, %arg3: memref<1x16xf32, #tpu.memory_space<vmem>>, %arg4: memref<2x16xf32, #tpu.memory_space<vmem>>) attributes {dimension_semantics = [#tpu.dimension_semantics<arbitrary>], iteration_bounds = array<i64: 1>, scalar_prefetch = 0 : i64, scratch_operands = 0 : i64, tpu.core_type = #tpu.core_type<tc>, window_params = [{pipeline_mode = #tpu.pipeline_mode<synchronous>, transform_indices = @transform_0, window_bounds = array<i64: 2, 32>}, {pipeline_mode = #tpu.pipeline_mode<synchronous>, transform_indices = @transform_1, window_bounds = array<i64: 16, 32>}, {pipeline_mode = #tpu.pipeline_mode<synchronous>, transform_indices = @transform_2, window_bounds = array<i64: 1, 16>}, {pipeline_mode = #tpu.pipeline_mode<synchronous>, transform_indices = @transform_3, window_bounds = array<i64: 2, 16>}]} {
    %c0 = arith.constant 0 : index
    %c0_0 = arith.constant 0 : index
    %0 = vector.load %arg1[%c0, %c0_0] : memref<2x32xf32, #tpu.memory_space<vmem>>, vector<2x32xf32>
    %c0_1 = arith.constant 0 : index
    %c0_2 = arith.constant 0 : index
    %1 = vector.load %arg2[%c0_1, %c0_2] : memref<16x32xf32, #tpu.memory_space<vmem>>, vector<16x32xf32>
    %cst = arith.constant dense<0.000000e+00> : vector<2x16xf32>
    %2 = tpu.matmul %0, %1, %cst {dimension_numbers = #tpu.dot_dimension_numbers<[1], [1], [0], [0], [0, 0, 1, 0], [], []>} : vector<2x32xf32>, vector<16x32xf32>, vector<2x16xf32> -> vector<2x16xf32>
    %c0_3 = arith.constant 0 : index
    %c0_4 = arith.constant 0 : index
    %3 = vector.load %arg3[%c0_3, %c0_4] : memref<1x16xf32, #tpu.memory_space<vmem>>, vector<1x16xf32>
    %4 = vector.broadcast %3 : vector<1x16xf32> to vector<2x16xf32>
    %5 = arith.addf %2, %4 : vector<2x16xf32>
    %c0_5 = arith.constant 0 : index
    %c0_6 = arith.constant 0 : index
    %6 = vector.load %arg4[%c0_5, %c0_6] : memref<2x16xf32, #tpu.memory_space<vmem>>, vector<2x16xf32>
    tpu.vector_store %arg4[%c0_5, %c0_6], %5 {strides = array<i32>} : memref<2x16xf32, #tpu.memory_space<vmem>>, vector<2x16xf32>,
    return
  }
  func.func @transform_0(%arg0: i32) -> (i32, i32) {
    %c0_i32 = arith.constant 0 : i32
    %c0_i32_0 = arith.constant 0 : i32
    %c0_i32_1 = arith.constant 0 : i32
    return %c0_i32, %c0_i32_0 : i32, i32
  }
  func.func @transform_1(%arg0: i32) -> (i32, i32) {
    %c0_i32 = arith.constant 0 : i32
    %c0_i32_0 = arith.constant 0 : i32
    %c0_i32_1 = arith.constant 0 : i32
    return %c0_i32, %c0_i32_0 : i32, i32
  }
  func.func @transform_2(%arg0: i32) -> (i32, i32) {
    %c0_i32 = arith.constant 0 : i32
    %c0_i32_0 = arith.constant 0 : i32
    %c0_i32_1 = arith.constant 0 : i32
    return %c0_i32, %c0_i32_0 : i32, i32
  }
  func.func @transform_3(%arg0: i32) -> (i32, i32) {
    %c0_i32 = arith.constant 0 : i32
    %c0_i32_0 = arith.constant 0 : i32
    %c0_i32_1 = arith.constant 0 : i32
    return %c0_i32, %c0_i32_0 : i32, i32
  }
}

</mosaic_0001>

<llo_original>
// kernel: tpu_custom_call.1
$region0: #{tpu_custom_call.1}
  #allocation0 [shape = 'u32[]', space=smem, size = 0x4, offset = 0x4, fixed_abs, tag = 'smem constant byte address 0x4 - core index']
  #allocation1 [shape = 'u32[144,128]{1,0:T(1,128)}', space=vmem, size = 0x12000, scoped, tag = 'internal scratch']
  %s0 = inlined_call_operand.hbm [shape: f32[2,32], index: 0, kind: input, shape index: {}]
  %s1 = inlined_call_operand.hbm [shape: f32[16,32], index: 1, kind: input, shape index: {}]
  %s2 = inlined_call_operand.vmem [shape: f32[1,16], index: 2, kind: input, shape index: {}]
  %s3 = inlined_call_operand.hbm [shape: f32[2,16], index: 3, kind: output, shape index: {}]
  %s4 = sld [smem:[#allocation0]]
  $region30: #{tpu_custom_call.1} parent=0
    _
  %s6 = ssub.s32 1, %s4
  %s7 = scalar_select 0, %s6, %s4
  $region1: #{tpu_custom_call.1} parent=0
    #allocation2 [shape = 'u8[1024]{0}', space=vmem, size = 0x400, scoped, tag = 'input window, operand 0, single buffered']
    #allocation3 [shape = 's32[1]{0}', space=sflag, size = 0x4, scoped, tag = 'scoped memory for tpu_custom_call.1']
    #allocation4 [shape = 's32[1]{0}', space=sflag, size = 0x4, scoped, tag = 'scoped memory for tpu_custom_call.1']
    #allocation5 [shape = 'u8[8192]{0}', space=vmem, size = 0x2000, scoped, tag = 'input window, operand 1, single buffered']
    #allocation6 [shape = 's32[1]{0}', space=sflag, size = 0x4, scoped, tag = 'scoped memory for tpu_custom_call.1']
    #allocation7 [shape = 'u8[1024]{0}', space=vmem, size = 0x400, scoped, tag = 'output window, operand 0, single buffered']
    %8 = vsyncpa [#allocation3], 0
    %9 = vsyncpa [#allocation6], 0
    %10 = vsyncpa [#allocation4], 0
    // Predicated region
    $region2: #{tpu_custom_call.1} parent=1 // pred_check
      _
    $region3: #{tpu_custom_call.1} parent=1 // pred_check_branch
      %12 = sbr.rel (0) target = $region5
    $region4: #{tpu_custom_call.1} parent=1 // pred_region
      %s14 = ssub.s32 32, 32
      %15 = vsyncadd [#allocation3], %s14
      %s17 = sshll.u32 [#allocation2], 4
      %s18 = int_to_ptr.vmem [resolvable:$true] %s17
      %20 = dma.hbm_to_vmem [thread:$0]  %s0, 32, %s18, [#allocation3]
    $region5: #{tpu_custom_call.1} parent=1 // pred_fallthru
      _
    // Predicated region
    $region6: #{tpu_custom_call.1} parent=1 // pred_check
      _
    $region7: #{tpu_custom_call.1} parent=1 // pred_check_branch
      %22 = sbr.rel (0) target = $region9
    $region8: #{tpu_custom_call.1} parent=1 // pred_region
      %s24 = ssub.s32 256, 256
      %25 = vsyncadd [#allocation6], %s24
      %s26 = sshll.u32 [#allocation5], 4
      %s27 = int_to_ptr.vmem [resolvable:$true] %s26
      %32 = dma.hbm_to_vmem [thread:$0]  %s1, 256, %s27, [#allocation6], 128, 128, 8
    $region9: #{tpu_custom_call.1} parent=1 // pred_fallthru
      _
    // Predicated region
    $region10: #{tpu_custom_call.1} parent=1 // pred_check
      _
    $region11: #{tpu_custom_call.1} parent=1 // pred_check_branch
      %34 = sbr.rel (0) target = $region13
    $region12: #{tpu_custom_call.1} parent=1 // pred_region
      _
    $region13: #{tpu_custom_call.1} parent=1 // pred_fallthru
      _
    // Predicated region
    $region14: #{tpu_custom_call.1} parent=1 // pred_check
      _
    $region15: #{tpu_custom_call.1} parent=1 // pred_check_branch
      %36 = sbr.rel (0) target = $region17
    $region16: #{tpu_custom_call.1} parent=1 // pred_region
      %37 = dma.done [#allocation3], 32
    $region17: #{tpu_custom_call.1} parent=1 // pred_fallthru
      _
    // Predicated region
    $region18: #{tpu_custom_call.1} parent=1 // pred_check
      _
    $region19: #{tpu_custom_call.1} parent=1 // pred_check_branch
      %39 = sbr.rel (0) target = $region21
    $region20: #{tpu_custom_call.1} parent=1 // pred_region
      %40 = dma.done [#allocation6], 256
    $region21: #{tpu_custom_call.1} parent=1 // pred_fallthru
      _
    %v41 = vld [vmem:[#allocation2] sm:$0x3]
    %v42 = vld [vmem:[#allocation5] sm:$0xff]
    %v43 = vld [vmem:[#allocation5 + $0x8] sm:$0xff]
    %v44 = vld [vmem:[%s2] sm:$0x1]
    %v46 = vlaneseq
    %v47 = vshrl.u32 %v46, 7
    %v48 = vsub.s32 0, %v47
    %v49 = vrot.slane %v44, %v48
    %vm51 = vcmask 261120
    %v53 = vsel %vm51, %v41, 0
    %v56 = vsel %vm51, %v42, 0
    %v59 = vsel %vm51, %v43, 0
    %61 = vmatprep.subr.mxu0 0.0
    %62 = vmatpush1.xpose.msra.mxu0 %v56
    %63 = vmatprep.subr.mxu0 0.0
    %64 = vmatpush1.xpose.msra.mxu0 %v59
    %65 = vmatprep.subr.mxu0 0.0
    %66 = vmatpush1.xpose.msra.mxu0 0.0
    %67 = vmatprep.subr.mxu0 0.0
    %68 = vmatpush1.xpose.msra.mxu0 0.0
    %69 = vmatprep.subr.mxu0 0.0
    %70 = vmatpush1.xpose.msra.mxu0 0.0
    %71 = vmatprep.subr.mxu0 0.0
    %72 = vmatpush1.xpose.msra.mxu0 0.0
    %73 = vmatprep.subr.mxu0 0.0
    %74 = vmatpush1.xpose.msra.mxu0 0.0
    %75 = vmatprep.subr.mxu0 0.0
    %76 = vmatpush1.xpose.msra.mxu0 0.0
    %77 = vmatprep.subr.mxu0 0.0
    %78 = vmatpush1.xpose.msra.mxu0 0.0
    %79 = vmatprep.subr.mxu0 0.0
    %80 = vmatpush1.xpose.msra.mxu0 0.0
    %81 = vmatprep.subr.mxu0 0.0
    %82 = vmatpush1.xpose.msra.mxu0 0.0
    %83 = vmatprep.subr.mxu0 0.0
    %84 = vmatpush1.xpose.msra.mxu0 0.0
    %85 = vmatprep.subr.mxu0 0.0
    %86 = vmatpush1.xpose.msra.mxu0 0.0
    %87 = vmatprep.subr.mxu0 0.0
    %88 = vmatpush1.xpose.msra.mxu0 0.0
    %89 = vmatprep.subr.mxu0 0.0
    %90 = vmatpush1.xpose.msra.mxu0 0.0
    %91 = vmatprep.subr.mxu0 0.0
    %92 = vmatpush1.xpose.msra.mxu0 0.0
    %93 = vmatprep.subr.mxu0 0.0
    %94 = vmatpush1.xpose.msra.mxu0 0.0
    %95 = vmatprep.subr.mxu0 0.0
    %96 = vmatpush1.xpose.msra.mxu0 0.0
    %97 = vmatprep.subr.mxu0 0.0
    %98 = vmatpush1.xpose.msra.mxu0 0.0
    %99 = vmatprep.subr.mxu0 0.0
    %100 = vmatpush1.xpose.msra.mxu0 0.0
    %101 = vmatprep.subr.mxu0 0.0
    %102 = vmatpush1.xpose.msra.mxu0 0.0
    %103 = vmatprep.subr.mxu0 0.0
    %104 = vmatpush1.xpose.msra.mxu0 0.0
    %105 = vmatprep.subr.mxu0 0.0
    %106 = vmatpush1.xpose.msra.mxu0 0.0
    %107 = vmatprep.subr.mxu0 0.0
    %108 = vmatpush1.xpose.msra.mxu0 0.0
    %109 = vmatprep.subr.mxu0 0.0
    %110 = vmatpush1.xpose.msra.mxu0 0.0
    %111 = vmatprep.subr.mxu0 0.0
    %112 = vmatpush1.xpose.msra.mxu0 0.0
    %113 = vmatprep.subr.mxu0 0.0
    %114 = vmatpush1.xpose.msra.mxu0 0.0
    %115 = vmatprep.subr.mxu0 0.0
    %116 = vmatpush1.xpose.msra.mxu0 0.0
    %117 = vmatprep.subr.mxu0 0.0
    %118 = vmatpush1.xpose.msra.mxu0 0.0
    %119 = vmatprep.subr.mxu0 0.0
    %120 = vmatpush1.xpose.msra.mxu0 0.0
    %121 = vmatprep.subr.mxu0 0.0
    %122 = vmatpush1.xpose.msra.mxu0 0.0
    %123 = vmatprep.subr.mxu0 0.0
    %124 = vmatpush1.xpose.msra.mxu0 0.0
    %125 = vmatprep.mubr.f32.mxu0 0.0
    %126 = vmatmul.mubr.f32.gmra.mrb[0].mxu0 %v53
    %v127 = vpop.f32.mrb[0].mxu0
    %v128 = vadd.f32 %v49, %v127
    %v129 = vpop.f32.mrb[0].mxu0
    %130 = vdwg.mxu0
    %vm131 = vcmask 123904
    %132 = vst.msk [vmem:[#allocation7] sm:$0x3] %vm131, %v128
    // Predicated region
    $region22: #{tpu_custom_call.1} parent=1 // pred_check
      _
    $region23: #{tpu_custom_call.1} parent=1 // pred_check_branch
      %134 = sbr.rel (0) target = $region25
    $region24: #{tpu_custom_call.1} parent=1 // pred_region
      %s136 = ssub.s32 32, 32
      %137 = vsyncadd [#allocation4], %s136
      %s139 = sshll.u32 [#allocation7], 4
      %s140 = int_to_ptr.vmem [resolvable:$true] %s139
      %142 = dma.vmem_to_hbm [thread:$0]  %s140, 32, %s3, [#allocation4]
    $region25: #{tpu_custom_call.1} parent=1 // pred_fallthru
      _
    // Predicated region
    $region26: #{tpu_custom_call.1} parent=1 // pred_check
      _
    $region27: #{tpu_custom_call.1} parent=1 // pred_check_branch
      %144 = sbr.rel (0) target = $region29
    $region28: #{tpu_custom_call.1} parent=1 // pred_region
      %145 = dma.done [#allocation4], 32
    $region29: #{tpu_custom_call.1} parent=1 // pred_fallthru
      _
    %146 = vsyncpa [#allocation3], 1
    %147 = vsyncpa [#allocation6], 1
    %148 = vsyncpa [#allocation4], 1

</llo_original>
